<compile_context>
chip_gen: v7x
topology: tpu7x:2x2x1
jax: 0.10.0
libtpu: 0.0.40
codegen_flags: <defaults>
</compile_context>

<pallas_src>
import jax
import jax.numpy as jnp
from jax.experimental import pallas as pl
from jax.experimental.pallas import tpu as pltpu


# ---------------------------------------------------------------------------
# Weight preparation (hoisted: call ONCE per model / sequence, not per step).
# ---------------------------------------------------------------------------
def prepare_lstm_weights(w_ih, w_hh, b_hh, compute_dtype=None):
    """Pack PyTorch-layout LSTMCell weights for the Pallas kernels.

    Args:
      w_ih : (4H, input_size)  nn.Linear weight of the input->hidden map.
      w_hh : (4H, H)           nn.Linear weight of the hidden->hidden map.
      b_hh : (4H,) or None     bias of the hidden->hidden map.
      compute_dtype : optional matmul-operand dtype (e.g. jnp.bfloat16 on
                      v6e/v7x).  Accumulation is always f32 inside the kernel.

    Returns:
      w : (input_size + H, 4H) stacked, transposed, gate-reordered weights.
      b : (1, 4H)              gate-reordered bias (zeros if b_hh is None).

    Gate order in the packed 4H axis is [i | f | o | g] so the kernel applies
    one sigmoid to a contiguous 3H slice and one tanh to the last H slice.
    """
    four_h, _ = w_ih.shape
    H = four_h // 4
    dtype = compute_dtype if compute_dtype is not None else w_ih.dtype

    w = jnp.concatenate(
        [jnp.asarray(w_ih, dtype).T, jnp.asarray(w_hh, dtype).T], axis=0)  # (I+H, 4H)
    if b_hh is None:
        b = jnp.zeros((1, 4 * H), dtype)
    else:
        b = jnp.asarray(b_hh, dtype).reshape(1, 4 * H)

    # [i | f | g | o]  ->  [i | f | o | g]
    reorder = lambda m: jnp.concatenate(
        [m[:, :2 * H], m[:, 3 * H:], m[:, 2 * H:3 * H]], axis=1)
    return reorder(w), reorder(b)


def _gates_to_state(gates, c_prev, H):
    """gates is (B, 4H) f32 in [i|f|o|g] order; c_prev is (B, H) f32."""
    sig = jax.nn.sigmoid(gates[:, :3 * H])        # one contiguous sigmoid slice
    g = jnp.tanh(gates[:, 3 * H:])                # one contiguous tanh slice
    i = sig[:, :H]
    f = sig[:, H:2 * H]
    o = sig[:, 2 * H:3 * H]
    c_new = f * c_prev + i * g
    h_new = o * jnp.tanh(c_new)
    return h_new, c_new


# ---------------------------------------------------------------------------
# Single-step kernel (matches the PyTorch module's forward).
# ---------------------------------------------------------------------------
def _lstm_cell_kernel(xh_ref, cx_ref, w_ref, b_ref, hy_ref, cy_ref):
    H = hy_ref.shape[-1]
    # One fused MXU matmul: (tb, I+H) @ (I+H, 4H), f32 accumulation.
    gates = jnp.dot(xh_ref[...], w_ref[...], preferred_element_type=jnp.float32)
    gates = gates + b_ref[...].astype(jnp.float32)
    hy, cy = _gates_to_state(gates, cx_ref[...].astype(jnp.float32), H)
    hy_ref[...] = hy.astype(hy_ref.dtype)
    cy_ref[...] = cy.astype(cy_ref.dtype)


def lstm_cell(x, hx, cx, w, b, *, tile_b=128):
    """One LSTMCell step.  `w`, `b` come from prepare_lstm_weights()."""
    B = x.shape[0]
    H = hx.shape[-1]
    IH = w.shape[0]
    out_dtype = hx.dtype

    # Fuse the two matmul operands into one (B, I+H) activation slab.
    xh = jnp.concatenate([x, hx], axis=-1).astype(w.dtype)

    tb = min(tile_b, B)
    grid = (pl.cdiv(B, tb),)

    w_bytes = jnp.dtype(w.dtype).itemsize
    o_bytes = jnp.dtype(out_dtype).itemsize
    cost = pl.CostEstimate(
        flops=2 * B * IH * 4 * H,
        transcendentals=5 * B * H,
        bytes_accessed=(xh.size + w.size + b.size) * w_bytes
                       + (cx.size + 2 * B * H) * o_bytes,
    )

    # NOTE: input_output_aliases={1: 1} (cx -> cy) is a further small win when
    # the caller loops over timesteps and can donate the state buffer; the fused
    # lstm_sequence() below removes the per-step state round-trip entirely.
    hy, cy = pl.pallas_call(
        _lstm_cell_kernel,
        out_shape=(jax.ShapeDtypeStruct((B, H), out_dtype),
                   jax.ShapeDtypeStruct((B, H), out_dtype)),
        grid_spec=pltpu.PrefetchScalarGridSpec(
            num_scalar_prefetch=0,
            grid=grid,
            in_specs=[
                pl.BlockSpec((tb, IH), lambda i: (i, 0)),
                pl.BlockSpec((tb, H), lambda i: (i, 0)),
                pl.BlockSpec((IH, 4 * H), lambda i: (0, 0)),   # weights: one block
                pl.BlockSpec((1, 4 * H), lambda i: (0, 0)),
            ],
            out_specs=(
                pl.BlockSpec((tb, H), lambda i: (i, 0)),
                pl.BlockSpec((tb, H), lambda i: (i, 0)),
            ),
        ),
        compiler_params=pltpu.CompilerParams(
            dimension_semantics=("parallel",)),    # batch tiles -> both TCs on v7x
        cost_estimate=cost,
    )(xh, cx, w, b)
    return hy, cy


# ---------------------------------------------------------------------------
# Fused-sequence kernel: the whole time loop in one pallas_call.
# Weights loaded into VMEM once (constant block index), h/c carried in f32
# VMEM scratch across grid steps, x_t streamed via the time-axis index_map.
# For very large H (weights > VMEM, esp. v7x's 64 MiB) the 4H axis would need
# tiling with pl.Buffered; not required at these shapes.
# ---------------------------------------------------------------------------
def _lstm_seq_kernel(x_ref, h0_ref, c0_ref, w_ref, b_ref,
                     hs_ref, cy_ref,
                     h_sc, c_sc, xh_sc):
    I = x_ref.shape[-1]
    H = h_sc.shape[-1]

    @pl.when(pl.program_id(0) == 0)
    def _():
        h_sc[...] = h0_ref[...].astype(jnp.float32)
        c_sc[...] = c0_ref[...].astype(jnp.float32)

    # Assemble [x_t | h_{t-1}] in VMEM, then one fused MXU matmul against the
    # resident (I+H, 4H) weight block.
    xh_sc[:, :I] = x_ref[0].astype(xh_sc.dtype)
    xh_sc[:, I:] = h_sc[...].astype(xh_sc.dtype)
    gates = jnp.dot(xh_sc[...], w_ref[...], preferred_element_type=jnp.float32)
    gates = gates + b_ref[...].astype(jnp.float32)

    h_new, c_new = _gates_to_state(gates, c_sc[...], H)
    h_sc[...] = h_new        # state carried across grid steps in f32 (no drift)
    c_sc[...] = c_new

    hs_ref[0] = h_new.astype(hs_ref.dtype)          # per-step hidden output
    cy_ref[...] = c_new.astype(cy_ref.dtype)        # resident block: final c


def lstm_sequence(xs, h0, c0, w, b):
    """Run the LSTMCell over a whole sequence inside one pallas_call.

    xs : (T, B, input_size);  h0, c0 : (B, H);  w, b from prepare_lstm_weights.
    Returns (hs, hy, cy): hs is (T, B, H), hy == hs[-1], cy is the final (B, H).
    """
    T, B, I = xs.shape
    H = h0.shape[-1]
    IH = w.shape[0]
    out_dtype = h0.dtype

    xs = xs.astype(w.dtype)

    w_bytes = jnp.dtype(w.dtype).itemsize
    o_bytes = jnp.dtype(out_dtype).itemsize
    cost = pl.CostEstimate(
        flops=2 * T * B * IH * 4 * H,
        transcendentals=5 * T * B * H,
        bytes_accessed=(xs.size + w.size + b.size) * w_bytes
                       + (h0.size + c0.size + T * B * H + B * H) * o_bytes,
    )

    hs, cy = pl.pallas_call(
        _lstm_seq_kernel,
        out_shape=(jax.ShapeDtypeStruct((T, B, H), out_dtype),
                   jax.ShapeDtypeStruct((B, H), out_dtype)),
        grid_spec=pltpu.PrefetchScalarGridSpec(
            num_scalar_prefetch=0,
            grid=(T,),
            in_specs=[
                pl.BlockSpec((1, B, I), lambda t: (t, 0, 0)),   # x_t streamed
                pl.BlockSpec((B, H), lambda t: (0, 0)),
                pl.BlockSpec((B, H), lambda t: (0, 0)),
                # Constant block index: stacked weight / bias are DMA'd once and
                # stay VMEM-resident for the whole sequence.
                pl.BlockSpec((IH, 4 * H), lambda t: (0, 0)),
                pl.BlockSpec((1, 4 * H), lambda t: (0, 0)),
            ],
            out_specs=(
                pl.BlockSpec((1, B, H), lambda t: (t, 0, 0)),
                pl.BlockSpec((B, H), lambda t: (0, 0)),
            ),
            scratch_shapes=[
                pltpu.VMEM((B, H), jnp.float32),   # h carry (f32 across steps)
                pltpu.VMEM((B, H), jnp.float32),   # c carry (f32 across steps)
                pltpu.VMEM((B, IH), w.dtype),      # [x_t | h_{t-1}] staging
            ],
        ),
        compiler_params=pltpu.CompilerParams(
            dimension_semantics=("arbitrary",)),   # time recurrence
        cost_estimate=cost,
    )(xs, h0, c0, w, b)

    return hs, hs[-1], cy


# ---------------------------------------------------------------------------
# Pure-JAX reference matching the PyTorch forward.
# ---------------------------------------------------------------------------
def lstm_cell_ref(x, hx, cx, w_ih, w_hh, b_hh):
    gates = x @ w_ih.T + hx @ w_hh.T
    if b_hh is not None:
        gates = gates + b_hh
    H = hx.shape[-1]
    i = jax.nn.sigmoid(gates[:, :H])
    f = jax.nn.sigmoid(gates[:, H:2 * H])
    g = jnp.tanh(gates[:, 2 * H:3 * H])
    o = jax.nn.sigmoid(gates[:, 3 * H:])
    cy = f * cx + i * g
    hy = o * jnp.tanh(cy)
    return hy, cy


if __name__ == "__main__":
    # TODO(synk): backward-hook registration in the module is autograd-only and
    # has no forward-pass equivalent; the forward math is fully implemented.
    B, input_size, hidden_size, T = 8, 16, 32, 8
    dtype = jnp.float32

    key = jax.random.PRNGKey(0)
    kx, ks, kh, kc, kwi, kwh, kb = jax.random.split(key, 7)

    x = jax.random.normal(kx, (B, input_size), dtype)
    xs = jax.random.normal(ks, (T, B, input_size), dtype)
    hx = jax.random.normal(kh, (B, hidden_size), dtype)
    cx = jax.random.normal(kc, (B, hidden_size), dtype)

    bound_ih = 1.0 / (input_size ** 0.5)
    bound_hh = 1.0 / (hidden_size ** 0.5)
    w_ih = jax.random.uniform(kwi, (4 * hidden_size, input_size), dtype,
                              -bound_ih, bound_ih)
    w_hh = jax.random.uniform(kwh, (4 * hidden_size, hidden_size), dtype,
                              -bound_hh, bound_hh)
    b_hh = jax.random.uniform(kb, (4 * hidden_size,), dtype,
                              -bound_hh, bound_hh)

    # Hoisted weight prep: once per model, reused by every step / sequence.
    w, b = prepare_lstm_weights(w_ih, w_hh, b_hh)

    # --- single cell (matches the PyTorch module's forward) -----------------
    hy, cy = lstm_cell(x, hx, cx, w, b)
    jax.block_until_ready((hy, cy))
    hy_ref, cy_ref = lstm_cell_ref(x, hx, cx, w_ih, w_hh, b_hh)
    assert jnp.allclose(hy, hy_ref, atol=1e-5, rtol=1e-5)
    assert jnp.allclose(cy, cy_ref, atol=1e-5, rtol=1e-5)

    # --- fused sequence (time loop inside one kernel) ------------------------
    hs, hT, cT = lstm_sequence(xs, hx, cx, w, b)
    jax.block_until_ready((hs, hT, cT))

    h_r, c_r = hx, cx
    hs_ref = []
    for t in range(T):
        h_r, c_r = lstm_cell_ref(xs[t], h_r, c_r, w_ih, w_hh, b_hh)
        hs_ref.append(h_r)
    hs_ref = jnp.stack(hs_ref, axis=0)

    assert jnp.allclose(hs, hs_ref, atol=1e-5, rtol=1e-5)
    assert jnp.allclose(hT, h_r, atol=1e-5, rtol=1e-5)
    assert jnp.allclose(cT, c_r, atol=1e-5, rtol=1e-5)

    print("KERNEL_OK")
</pallas_src>

<mosaic_0001>
module attributes {stable_mosaic.version = 11 : i64} {
  func.func @_lstm_cell_kernel(%arg0: i32, %arg1: memref<8x48xf32, #tpu.memory_space<vmem>>, %arg2: memref<8x32xf32, #tpu.memory_space<vmem>>, %arg3: memref<48x128xf32, #tpu.memory_space<vmem>>, %arg4: memref<1x128xf32, #tpu.memory_space<vmem>>, %arg5: memref<8x32xf32, #tpu.memory_space<vmem>>, %arg6: memref<8x32xf32, #tpu.memory_space<vmem>>) attributes {dimension_semantics = [#tpu.dimension_semantics<parallel>], iteration_bounds = array<i64: 1>, scalar_prefetch = 0 : i64, scratch_operands = 0 : i64, tpu.core_type = #tpu.core_type<tc>, window_params = [{transform_indices = @transform_0, window_bounds = array<i64: 8, 48>}, {transform_indices = @transform_1, window_bounds = array<i64: 8, 32>}, {pipeline_mode = #tpu.pipeline_mode<synchronous>, transform_indices = @transform_2, window_bounds = array<i64: 48, 128>}, {pipeline_mode = #tpu.pipeline_mode<synchronous>, transform_indices = @transform_3, window_bounds = array<i64: 1, 128>}, {transform_indices = @transform_4, window_bounds = array<i64: 8, 32>}, {transform_indices = @transform_5, window_bounds = array<i64: 8, 32>}]} {
    %c0 = arith.constant 0 : index
    %c0_0 = arith.constant 0 : index
    %0 = vector.load %arg1[%c0, %c0_0] : memref<8x48xf32, #tpu.memory_space<vmem>>, vector<8x48xf32>
    %c0_1 = arith.constant 0 : index
    %c0_2 = arith.constant 0 : index
    %1 = vector.load %arg3[%c0_1, %c0_2] : memref<48x128xf32, #tpu.memory_space<vmem>>, vector<48x128xf32>
    %cst = arith.constant dense<0.000000e+00> : vector<8x128xf32>
    %2 = tpu.matmul %0, %1, %cst {dimension_numbers = #tpu.dot_dimension_numbers<[1], [0], [0], [1], [0, 0, 1, 1], [], []>} : vector<8x48xf32>, vector<48x128xf32>, vector<8x128xf32> -> vector<8x128xf32>
    %c0_3 = arith.constant 0 : index
    %c0_4 = arith.constant 0 : index
    %3 = vector.load %arg4[%c0_3, %c0_4] : memref<1x128xf32, #tpu.memory_space<vmem>>, vector<1x128xf32>
    %4 = vector.broadcast %3 : vector<1x128xf32> to vector<8x128xf32>
    %5 = arith.addf %2, %4 : vector<8x128xf32>
    %c0_5 = arith.constant 0 : index
    %c0_6 = arith.constant 0 : index
    %6 = vector.load %arg2[%c0_5, %c0_6] : memref<8x32xf32, #tpu.memory_space<vmem>>, vector<8x32xf32>
    %7 = vector.extract_strided_slice %5 {offsets = [0, 0], sizes = [8, 96], strides = [1, 1]} : vector<8x128xf32> to vector<8x96xf32>
    %8 = arith.negf %7 : vector<8x96xf32>
    %9 = math.exp %8 : vector<8x96xf32>
    %cst_7 = arith.constant 1.000000e+00 : f32
    %10 = vector.broadcast %cst_7 : f32 to vector<8x96xf32>
    %11 = arith.addf %10, %9 : vector<8x96xf32>
    %12 = arith.divf %10, %11 : vector<8x96xf32>
    %13 = vector.extract_strided_slice %5 {offsets = [0, 96], sizes = [8, 32], strides = [1, 1]} : vector<8x128xf32> to vector<8x32xf32>
    %14 = math.tanh %13 : vector<8x32xf32>
    %15 = vector.extract_strided_slice %12 {offsets = [0, 0], sizes = [8, 32], strides = [1, 1]} : vector<8x96xf32> to vector<8x32xf32>
    %16 = vector.extract_strided_slice %12 {offsets = [0, 32], sizes = [8, 32], strides = [1, 1]} : vector<8x96xf32> to vector<8x32xf32>
    %17 = vector.extract_strided_slice %12 {offsets = [0, 64], sizes = [8, 32], strides = [1, 1]} : vector<8x96xf32> to vector<8x32xf32>
    %18 = arith.mulf %16, %6 : vector<8x32xf32>
    %19 = arith.mulf %15, %14 : vector<8x32xf32>
    %20 = arith.addf %18, %19 : vector<8x32xf32>
    %21 = math.tanh %20 : vector<8x32xf32>
    %22 = arith.mulf %17, %21 : vector<8x32xf32>
    %c0_8 = arith.constant 0 : index
    %c0_9 = arith.constant 0 : index
    %23 = vector.load %arg5[%c0_8, %c0_9] : memref<8x32xf32, #tpu.memory_space<vmem>>, vector<8x32xf32>
    tpu.vector_store %arg5[%c0_8, %c0_9], %22 {strides = array<i32>} : memref<8x32xf32, #tpu.memory_space<vmem>>, vector<8x32xf32>,
    %c0_10 = arith.constant 0 : index
    %c0_11 = arith.constant 0 : index
    %24 = vector.load %arg6[%c0_10, %c0_11] : memref<8x32xf32, #tpu.memory_space<vmem>>, vector<8x32xf32>
    tpu.vector_store %arg6[%c0_10, %c0_11], %20 {strides = array<i32>} : memref<8x32xf32, #tpu.memory_space<vmem>>, vector<8x32xf32>,
    return
  }
  func.func @transform_0(%arg0: i32) -> (i32, i32) {
    %c0_i32 = arith.constant 0 : i32
    %c0_i32_0 = arith.constant 0 : i32
    return %arg0, %c0_i32 : i32, i32
  }
  func.func @transform_1(%arg0: i32) -> (i32, i32) {
    %c0_i32 = arith.constant 0 : i32
    %c0_i32_0 = arith.constant 0 : i32
    return %arg0, %c0_i32 : i32, i32
  }
  func.func @transform_2(%arg0: i32) -> (i32, i32) {
    %c0_i32 = arith.constant 0 : i32
    %c0_i32_0 = arith.constant 0 : i32
    %c0_i32_1 = arith.constant 0 : i32
    return %c0_i32, %c0_i32_0 : i32, i32
  }
  func.func @transform_3(%arg0: i32) -> (i32, i32) {
    %c0_i32 = arith.constant 0 : i32
    %c0_i32_0 = arith.constant 0 : i32
    %c0_i32_1 = arith.constant 0 : i32
    return %c0_i32, %c0_i32_0 : i32, i32
  }
  func.func @transform_4(%arg0: i32) -> (i32, i32) {
    %c0_i32 = arith.constant 0 : i32
    %c0_i32_0 = arith.constant 0 : i32
    return %arg0, %c0_i32 : i32, i32
  }
  func.func @transform_5(%arg0: i32) -> (i32, i32) {
    %c0_i32 = arith.constant 0 : i32
    %c0_i32_0 = arith.constant 0 : i32
    return %arg0, %c0_i32 : i32, i32
  }
}

</mosaic_0001>

<llo_original>
// kernel: tpu_custom_call.1
$region0: #{tpu_custom_call.1}
  #allocation0 [shape = 'u32[]', space=smem, size = 0x4, offset = 0x4, fixed_abs, tag = 'smem constant byte address 0x4 - core index']
  #allocation1 [shape = 'u32[144,128]{1,0:T(1,128)}', space=vmem, size = 0x12000, scoped, tag = 'internal scratch']
  %s0 = inlined_call_operand.hbm [shape: f32[8,48], index: 0, kind: input, shape index: {}]
  %s1 = inlined_call_operand.hbm [shape: f32[8,32], index: 1, kind: input, shape index: {}]
  %s2 = inlined_call_operand.hbm [shape: f32[48,128], index: 2, kind: input, shape index: {}]
  %s3 = inlined_call_operand.vmem [shape: f32[1,128], index: 3, kind: input, shape index: {}]
  %s4 = inlined_call_operand.hbm [shape: f32[8,32], index: 4, kind: output, shape index: {0}]
  %s5 = inlined_call_operand.hbm [shape: f32[8,32], index: 5, kind: output, shape index: {1}]
  %6 = xla_tuple %s4, %s5
  %s7 = sld [smem:[#allocation0]]
  $region46: #{tpu_custom_call.1} parent=0
    _
  %s9 = ssub.s32 1, %s7
  %s10 = scalar_select 0, %s9, %s7
  $region1: #{tpu_custom_call.1} parent=0
    #allocation2 [shape = 'u8[4096]{0}', space=vmem, size = 0x1000, scoped, tag = 'input window, operand 0, single buffered']
    #allocation3 [shape = 's32[1]{0}', space=sflag, size = 0x4, scoped, tag = 'scoped memory for tpu_custom_call.1']
    #allocation4 [shape = 's32[1]{0}', space=sflag, size = 0x4, scoped, tag = 'scoped memory for tpu_custom_call.1']
    #allocation5 [shape = 'u8[4096]{0}', space=vmem, size = 0x1000, scoped, tag = 'input window, operand 1, single buffered']
    #allocation6 [shape = 's32[1]{0}', space=sflag, size = 0x4, scoped, tag = 'scoped memory for tpu_custom_call.1']
    #allocation7 [shape = 'u8[24576]{0}', space=vmem, size = 0x6000, scoped, tag = 'input window, operand 2, single buffered']
    #allocation8 [shape = 'u8[4096]{0}', space=vmem, size = 0x1000, scoped, tag = 'output window, operand 0, single buffered']
    #allocation9 [shape = 'u8[4096]{0}', space=vmem, size = 0x1000, scoped, tag = 'output window, operand 1, single buffered']
    #allocation10 [shape = 's32[1]{0}', space=sflag, size = 0x4, scoped, tag = 'scoped memory for tpu_custom_call.1']
    %11 = vsyncpa [#allocation3], 0
    %12 = vsyncpa [#allocation6], 0
    %13 = vsyncpa [#allocation4], 0
    %14 = vsyncpa [#allocation10], 0
    // Predicated region
    $region2: #{tpu_custom_call.1} parent=1 // pred_check
      _
    $region3: #{tpu_custom_call.1} parent=1 // pred_check_branch
      %16 = sbr.rel (0) target = $region5
    $region4: #{tpu_custom_call.1} parent=1 // pred_region
      %s18 = ssub.s32 128, 128
      %19 = vsyncadd [#allocation3], %s18
      %s21 = sshll.u32 [#allocation2], 4
      %s22 = int_to_ptr.vmem [resolvable:$true] %s21
      %24 = dma.hbm_to_vmem [thread:$0]  %s0, 128, %s22, [#allocation3]
    $region5: #{tpu_custom_call.1} parent=1 // pred_fallthru
      _
    // Predicated region
    $region6: #{tpu_custom_call.1} parent=1 // pred_check
      _
    $region7: #{tpu_custom_call.1} parent=1 // pred_check_branch
      %26 = sbr.rel (0) target = $region9
    $region8: #{tpu_custom_call.1} parent=1 // pred_region
      %s28 = ssub.s32 128, 128
      %29 = vsyncadd [#allocation6], %s28
      %s31 = sshll.u32 [#allocation5], 4
      %s32 = int_to_ptr.vmem [resolvable:$true] %s31
      %34 = dma.hbm_to_vmem [thread:$0]  %s1, 128, %s32, [#allocation6]
    $region9: #{tpu_custom_call.1} parent=1 // pred_fallthru
      _
    // Predicated region
    $region10: #{tpu_custom_call.1} parent=1 // pred_check
      _
    $region11: #{tpu_custom_call.1} parent=1 // pred_check_branch
      %36 = sbr.rel (0) target = $region13
    $region12: #{tpu_custom_call.1} parent=1 // pred_region
      %s38 = ssub.s32 768, 768
      %39 = vsyncadd [#allocation6], %s38
      %s40 = sshll.u32 [#allocation7], 4
      %s41 = int_to_ptr.vmem [resolvable:$true] %s40
      %46 = dma.hbm_to_vmem [thread:$0]  %s2, 768, %s41, [#allocation6], 128, 128, 8
    $region13: #{tpu_custom_call.1} parent=1 // pred_fallthru
      _
    // Predicated region
    $region14: #{tpu_custom_call.1} parent=1 // pred_check
      _
    $region15: #{tpu_custom_call.1} parent=1 // pred_check_branch
      %48 = sbr.rel (0) target = $region17
    $region16: #{tpu_custom_call.1} parent=1 // pred_region
      _
    $region17: #{tpu_custom_call.1} parent=1 // pred_fallthru
      _
    // Predicated region
    $region18: #{tpu_custom_call.1} parent=1 // pred_check
      _
    $region19: #{tpu_custom_call.1} parent=1 // pred_check_branch
      %50 = sbr.rel (0) target = $region21
    $region20: #{tpu_custom_call.1} parent=1 // pred_region
      %51 = dma.done [#allocation3], 128
    $region21: #{tpu_custom_call.1} parent=1 // pred_fallthru
      _
    // Predicated region
    $region22: #{tpu_custom_call.1} parent=1 // pred_check
      _
    $region23: #{tpu_custom_call.1} parent=1 // pred_check_branch
      %53 = sbr.rel (0) target = $region25
    $region24: #{tpu_custom_call.1} parent=1 // pred_region
      %54 = dma.done [#allocation6], 128
    $region25: #{tpu_custom_call.1} parent=1 // pred_fallthru
      _
    // Predicated region
    $region26: #{tpu_custom_call.1} parent=1 // pred_check
      _
    $region27: #{tpu_custom_call.1} parent=1 // pred_check_branch
      %56 = sbr.rel (0) target = $region29
    $region28: #{tpu_custom_call.1} parent=1 // pred_region
      %57 = dma.done [#allocation6], 768
    $region29: #{tpu_custom_call.1} parent=1 // pred_fallthru
      _
    %v58 = vld [vmem:[#allocation2] sm:$0xff]
    %v59 = vld [vmem:[#allocation7] sm:$0xff]
    %v60 = vld [vmem:[#allocation7 + $0x8] sm:$0xff]
    %v61 = vld [vmem:[#allocation7 + $0x10] sm:$0xff]
    %v62 = vld [vmem:[#allocation7 + $0x18] sm:$0xff]
    %v63 = vld [vmem:[#allocation7 + $0x20] sm:$0xff]
    %v64 = vld [vmem:[#allocation7 + $0x28] sm:$0xff]
    %v65 = vld [vmem:[%s3] sm:$0x1]
    %v67 = vlaneseq
    %v68 = vshrl.u32 %v67, 7
    %v69 = vsub.s32 0, %v68
    %v70 = vrot.slane %v65, %v69
    %vm72 = vcmask 392192
    %v74 = vsel %vm72, %v58, 0
    %76 = vmatprep.subr.mxu0 0.0
    %77 = vmatpush1.msra.mxu0 %v59
    %78 = vmatprep.subr.mxu0 0.0
    %79 = vmatpush1.msra.mxu0 %v60
    %80 = vmatprep.subr.mxu0 0.0
    %81 = vmatpush1.msra.mxu0 %v61
    %82 = vmatprep.subr.mxu0 0.0
    %83 = vmatpush1.msra.mxu0 %v62
    %84 = vmatprep.subr.mxu0 0.0
    %85 = vmatpush1.msra.mxu0 %v63
    %86 = vmatprep.subr.mxu0 0.0
    %87 = vmatpush1.msra.mxu0 %v64
    %88 = vmatprep.subr.mxu0 0.0
    %89 = vmatpush1.msra.mxu0 0.0
    %90 = vmatprep.subr.mxu0 0.0
    %91 = vmatpush1.msra.mxu0 0.0
    %92 = vmatprep.subr.mxu0 0.0
    %93 = vmatpush1.msra.mxu0 0.0
    %94 = vmatprep.subr.mxu0 0.0
    %95 = vmatpush1.msra.mxu0 0.0
    %96 = vmatprep.subr.mxu0 0.0
    %97 = vmatpush1.msra.mxu0 0.0
    %98 = vmatprep.subr.mxu0 0.0
    %99 = vmatpush1.msra.mxu0 0.0
    %100 = vmatprep.subr.mxu0 0.0
    %101 = vmatpush1.msra.mxu0 0.0
    %102 = vmatprep.subr.mxu0 0.0
    %103 = vmatpush1.msra.mxu0 0.0
    %104 = vmatprep.subr.mxu0 0.0
    %105 = vmatpush1.msra.mxu0 0.0
    %106 = vmatprep.subr.mxu0 0.0
    %107 = vmatpush1.msra.mxu0 0.0
    %108 = vmatprep.subr.mxu0 0.0
    %109 = vmatpush1.msra.mxu0 0.0
    %110 = vmatprep.subr.mxu0 0.0
    %111 = vmatpush1.msra.mxu0 0.0
    %112 = vmatprep.subr.mxu0 0.0
    %113 = vmatpush1.msra.mxu0 0.0
    %114 = vmatprep.subr.mxu0 0.0
    %115 = vmatpush1.msra.mxu0 0.0
    %116 = vmatprep.subr.mxu0 0.0
    %117 = vmatpush1.msra.mxu0 0.0
    %118 = vmatprep.subr.mxu0 0.0
    %119 = vmatpush1.msra.mxu0 0.0
    %120 = vmatprep.subr.mxu0 0.0
    %121 = vmatpush1.msra.mxu0 0.0
    %122 = vmatprep.subr.mxu0 0.0
    %123 = vmatpush1.msra.mxu0 0.0
    %124 = vmatprep.subr.mxu0 0.0
    %125 = vmatpush1.msra.mxu0 0.0
    %126 = vmatprep.subr.mxu0 0.0
    %127 = vmatpush1.msra.mxu0 0.0
    %128 = vmatprep.subr.mxu0 0.0
    %129 = vmatpush1.msra.mxu0 0.0
    %130 = vmatprep.subr.mxu0 0.0
    %131 = vmatpush1.msra.mxu0 0.0
    %132 = vmatprep.subr.mxu0 0.0
    %133 = vmatpush1.msra.mxu0 0.0
    %134 = vmatprep.subr.mxu0 0.0
    %135 = vmatpush1.msra.mxu0 0.0
    %136 = vmatprep.subr.mxu0 0.0
    %137 = vmatpush1.msra.mxu0 0.0
    %138 = vmatprep.subr.mxu0 0.0
    %139 = vmatpush1.msra.mxu0 0.0
    %140 = vmatprep.mubr.f32.mxu0 0.0
    %141 = vmatmul.mubr.f32.gmra.mrb[0].mxu0 %v74
    %v142 = vpop.f32.mrb[0].mxu0
    %v143 = vadd.f32 %v70, %v142
    %v144 = vpop.f32.mrb[0].mxu0
    %145 = vdwg.mxu0
    %v146 = vld [vmem:[#allocation5] sm:$0xff]
    %v147 = vxor.u32 %v143, 2147483648
    %v148 = vmul.f32 %v147, 1.442695
    %v149 = vpow.pop %v148
    %v150 = vadd.f32 %v149, 1.0
    %v151 = vrcp.pop %v150
    %v152 = vmul.f32 1.0, %v151
    %v153 = vtanh.pop %v143
    %155 = vrot.lane.b32.xlu0 %v146, 32
    %v156 = vpop.permute.xlu0 %155
    %v158 = vmul.f32 %v152, %v156
    %160 = vrot.lane.b32.xlu0 %v153, 32
    %v161 = vpop.permute.xlu0 %160
    %v163 = vmul.f32 %v152, %v161
    %165 = vrot.lane.b32.xlu0 %v163, 32
    %v166 = vpop.permute.xlu0 %165
    %v168 = vadd.f32 %v158, %v166
    %v169 = vtanh.pop %v168
    %171 = vrot.lane.b32.xlu0 %v169, 32
    %v172 = vpop.permute.xlu0 %171
    %v174 = vmul.f32 %v152, %v172
    %176 = vrot.lane.b32.xlu0 %v174, 64
    %v177 = vpop.permute.xlu0 %176
    %vm179 = vcmask 261120
    %180 = vst.msk [vmem:[#allocation8] sm:$0xff] %vm179, %v177
    %182 = vrot.lane.b32.xlu0 %v168, 96
    %v183 = vpop.permute.xlu0 %182
    %185 = vst.msk [vmem:[#allocation9] sm:$0xff] %vm179, %v183
    // Predicated region
    $region30: #{tpu_custom_call.1} parent=1 // pred_check
      _
    $region31: #{tpu_custom_call.1} parent=1 // pred_check_branch
      %187 = sbr.rel (0) target = $region33
    $region32: #{tpu_custom_call.1} parent=1 // pred_region
      %s189 = ssub.s32 128, 128
      %190 = vsyncadd [#allocation4], %s189
      %s192 = sshll.u32 [#allocation8], 4
      %s193 = int_to_ptr.vmem [resolvable:$true] %s192
      %195 = dma.vmem_to_hbm [thread:$0]  %s193, 128, %s4, [#allocation4]
    $region33: #{tpu_custom_call.1} parent=1 // pred_fallthru
      _
    // Predicated region
    $region34: #{tpu_custom_call.1} parent=1 // pred_check
      _
    $region35: #{tpu_custom_call.1} parent=1 // pred_check_branch
      %197 = sbr.rel (0) target = $region37
    $region36: #{tpu_custom_call.1} parent=1 // pred_region
      %s199 = ssub.s32 128, 128
      %200 = vsyncadd [#allocation10], %s199
      %s202 = sshll.u32 [#allocation9], 4
      %s203 = int_to_ptr.vmem [resolvable:$true] %s202
      %205 = dma.vmem_to_hbm [thread:$0]  %s203, 128, %s5, [#allocation10]
    $region37: #{tpu_custom_call.1} parent=1 // pred_fallthru
      _
    // Predicated region
    $region38: #{tpu_custom_call.1} parent=1 // pred_check
      _
    $region39: #{tpu_custom_call.1} parent=1 // pred_check_branch
      %207 = sbr.rel (0) target = $region41
    $region40: #{tpu_custom_call.1} parent=1 // pred_region
      %208 = dma.done [#allocation4], 128
    $region41: #{tpu_custom_call.1} parent=1 // pred_fallthru
      _
    // Predicated region
    $region42: #{tpu_custom_call.1} parent=1 // pred_check
      _
    $region43: #{tpu_custom_call.1} parent=1 // pred_check_branch
      %210 = sbr.rel (0) target = $region45
    $region44: #{tpu_custom_call.1} parent=1 // pred_region
      %211 = dma.done [#allocation10], 128
    $region45: #{tpu_custom_call.1} parent=1 // pred_fallthru
      _
    %212 = vsyncpa [#allocation3], 1
    %213 = vsyncpa [#allocation6], 1
    %214 = vsyncpa [#allocation4], 1
    %215 = vsyncpa [#allocation10], 1

</llo_original>
